<compile_context>
chip_gen: v5e
topology: v5e:2x2
jax: 0.10.0
libtpu: 0.0.40
codegen_flags: <defaults>
</compile_context>

<pallas_src>
import jax
import jax.numpy as jnp
from jax.experimental import pallas as pl
from jax.experimental.pallas import tpu as pltpu

# ----- "conf" -----
VOCAB_SZ = 100
WORD_DIM = 32
KERNEL_SIZE = 3
FILTERS_NUM = 16
EMBEDDING_DIM = 32
NUM_USERS = 50
NUM_ITEMS = 60
AVG_RATING = 3.5
DOC_LEN = 32
BATCH = 8

FM_K = 10            # FM latent dim
LANES = 128          # lane-dense padded width
OUT_LANES = 128      # output slab width -> one unmasked vector store

# ---- packed f32 parameter-slab layout (128 x 128).  All slices start at lane 0,
#      sublane offsets are multiples of 8. ----
ROW_FCW = 0      # rows   0:32  cols 0:64  block-diagonal [user_fc_w | item_fc_w]
ROW_FREE = 32    # rows  32:40  cols 0:64  [free_user_emb[user] | free_item_emb[item]]
ROW_FCB = 40     # row      40  cols 0:64  [user_fc_b | item_fc_b]
ROW_WFM = 48     # rows  48:112 cols 0:12  [fm_V | dec_fc_w | 0.5*sum(fm_V^2,1)]
ROW_BASE = 112   # rows 112:120 col 0      b_users[u] + b_items[i] + dec_fc_b + avg_rating
ROW_LABEL = 120  # rows 120:128 col 0      label
SLAB_ROWS = 128


# ---------------- fused kernel ----------------
def deepconn_kernel(docs_ref, convw_ref, slab_ref, out_ref):
    """Single-launch fused DeepCoNN forward.

    docs_ref : (2B*S, 128) bf16  im2col windows [user rows | item rows];
                                 cols 0:K*D = window, col K*D = 1.0 (bias), rest 0
    convw_ref: (128, 2F)   bf16  rows 0:K*D = [user_w | item_w], row K*D = conv biases
    slab_ref : (128, 128)  f32   packed small params (see ROW_* layout above)
    out_ref  : (B, 128)    f32   col0=pred, col1=rating_loss, col2=obj_loss
    """
    B = out_ref.shape[0]
    F = convw_ref.shape[1] // 2
    S = docs_ref.shape[0] // (2 * B)
    K = KERNEL_SIZE
    E = EMBEDDING_DIM
    L = S - K + 1

    # ---- encoder: im2col conv == ONE bf16 MXU matmul (bias folded via ones col) ----
    y = jnp.dot(docs_ref[...], convw_ref[...],
                preferred_element_type=jnp.float32)              # (2B*S, 2F) f32
    h = jnp.maximum(y, 0.0).reshape(2 * B, S, 2 * F)             # ReLU
    pos = jax.lax.broadcasted_iota(jnp.int32, (2 * B, S, 2 * F), 1)
    h = jnp.where(pos < L, h, 0.0)       # mask wrapped windows; safe after ReLU (>=0)
    pooled = jnp.max(h, axis=1)                                  # (2B, 2F) max_pool1d

    # ---- fc: block-diagonal weight, user rows valid in cols 0:E, item rows in E:2E ----
    fcw = slab_ref[ROW_FCW:ROW_FCW + 2 * F, 0:2 * E]             # (2F, 2E)
    fcb = slab_ref[ROW_FCB:ROW_FCB + 1, 0:2 * E]                 # (1, 2E)
    feats = jnp.dot(pooled, fcw, preferred_element_type=jnp.float32) + fcb   # (2B, 2E)
    lane = jax.lax.broadcasted_iota(jnp.int32, (B, 2 * E), 1)
    enc = jnp.where(lane < E, feats[:B, :], feats[B:, :])        # (B, 2E) = [u_fea | i_fea]
    # TODO(synk): nn.Dropout is identity in eval mode; stochastic training dropout not applied.

    # ---- decoder_fm (reference multiplies review features by 0.0) ----
    free = slab_ref[ROW_FREE:ROW_FREE + B, 0:2 * E]              # (B, 2E)
    x = 0.0 * enc + free                                         # (B, 2E)
    wfm = slab_ref[ROW_WFM:ROW_WFM + 2 * E, 0:16]                # (2E, 16)
    x2 = jnp.concatenate([x, x * x], axis=0)                     # (2B, 2E)
    yfm = jnp.dot(x2, wfm, preferred_element_type=jnp.float32)   # (2B, 16)
    ya = yfm[:B, :]    # cols 0:10 = x@V ; col 10 = x@fc_w
    yb = yfm[B:, :]    # col 11 = 0.5 * (x^2 @ sum(V^2, 1))
    lanef = jax.lax.broadcasted_iota(jnp.int32, (B, 16), 1)
    contrib = jnp.where(lanef < FM_K, 0.5 * ya * ya,
              jnp.where(lanef == FM_K, ya,
              jnp.where(lanef == FM_K + 1, -yb, 0.0)))
    fm_plus_lin = jnp.sum(contrib, axis=1, keepdims=True)        # (B, 1)

    base = slab_ref[ROW_BASE:ROW_BASE + B, 0:1]                  # (B, 1)
    label = slab_ref[ROW_LABEL:ROW_LABEL + B, 0:1]               # (B, 1)
    pred = fm_plus_lin + base                                    # (B, 1)
    diff = pred - label
    rl = diff * diff                                             # mse 'none'
    obj = jnp.sum(rl, axis=0, keepdims=True)                     # (1, 1)  mse 'sum'

    # ---- single lane-dense (B, 128) unmasked store ----
    cols = jax.lax.broadcasted_iota(jnp.int32, (B, OUT_LANES), 1)
    out_ref[...] = jnp.where(cols == 0, pred,
                   jnp.where(cols == 1, rl,
                   jnp.where(cols == 2, obj, 0.0)))


# ---------------- parameter init (deterministic, synthetic) ----------------
def _xavier(key, shape):
    fan_in, fan_out = shape[0], shape[-1]
    std = (2.0 / (fan_in + fan_out)) ** 0.5
    return std * jax.random.normal(key, shape, jnp.float32)


def init_params(key):
    ks = jax.random.split(key, 16)
    p = {}
    # encoder
    p["user_word_emb"] = _xavier(ks[0], (VOCAB_SZ, WORD_DIM))
    p["item_word_emb"] = _xavier(ks[1], (VOCAB_SZ, WORD_DIM))
    p["user_conv_w"] = _xavier(ks[2], (KERNEL_SIZE, WORD_DIM, FILTERS_NUM))
    p["item_conv_w"] = _xavier(ks[3], (KERNEL_SIZE, WORD_DIM, FILTERS_NUM))
    p["user_conv_b"] = jnp.full((1, FILTERS_NUM), 0.1, jnp.float32)
    p["item_conv_b"] = jnp.full((1, FILTERS_NUM), 0.1, jnp.float32)
    p["user_fc_w"] = jax.random.uniform(ks[4], (FILTERS_NUM, EMBEDDING_DIM),
                                        jnp.float32, -0.1, 0.1)
    p["item_fc_w"] = jax.random.uniform(ks[5], (FILTERS_NUM, EMBEDDING_DIM),
                                        jnp.float32, -0.1, 0.1)
    p["user_fc_b"] = jnp.full((1, EMBEDDING_DIM), 0.1, jnp.float32)
    p["item_fc_b"] = jnp.full((1, EMBEDDING_DIM), 0.1, jnp.float32)
    # decoder
    dim = 2 * EMBEDDING_DIM
    p["free_user_emb"] = _xavier(ks[6], (NUM_USERS, EMBEDDING_DIM))
    p["free_item_emb"] = _xavier(ks[7], (NUM_ITEMS, EMBEDDING_DIM))
    p["dec_fc_w"] = jax.random.uniform(ks[8], (dim, 1), jnp.float32, -0.05, 0.05)
    p["dec_fc_b"] = jnp.zeros((1, 1), jnp.float32)
    p["fm_V"] = jax.random.uniform(ks[9], (dim, FM_K), jnp.float32, -0.05, 0.05)
    p["b_users"] = jax.random.uniform(ks[10], (NUM_USERS, 1), jnp.float32, 0.0, 0.1)
    p["b_items"] = jax.random.uniform(ks[11], (NUM_ITEMS, 1), jnp.float32, 0.0, 0.1)
    return p


# ---------------- full forward (deepconn.forward) ----------------
def deepconn_forward(params, user, item, label, user_doc, item_doc):
    B, S = user_doc.shape
    D, K, F, E = WORD_DIM, KERNEL_SIZE, FILTERS_NUM, EMBEDDING_DIM
    KD = K * D

    # TODO(synk): embedding-table gathers and the im2col window construction stay in
    # XLA (jnp.take / jnp.roll); a vocab gather has no clean single-tile Pallas form.
    u_emb = jnp.take(params["user_word_emb"], user_doc, axis=0)    # (B, S, D)
    i_emb = jnp.take(params["item_word_emb"], item_doc, axis=0)    # (B, S, D)

    def im2col(emb):  # (B, S, D) -> (B*S, K*D); windows past L wrap & are masked in-kernel
        return jnp.concatenate([jnp.roll(emb, -k, axis=1) for k in range(K)],
                               axis=2).reshape(B * S, KD)

    wins = jnp.concatenate([im2col(u_emb), im2col(i_emb)], axis=0)          # (2BS, KD)
    docs = jnp.concatenate(
        [wins,
         jnp.ones((2 * B * S, 1), jnp.float32),                              # bias column
         jnp.zeros((2 * B * S, LANES - KD - 1), jnp.float32)], axis=1)
    docs = docs.astype(jnp.bfloat16)                                          # (2BS, 128)

    # conv weights repacked for im2col, bias folded as an extra contraction row
    convw = jnp.zeros((LANES, 2 * F), jnp.float32)
    convw = convw.at[0:KD, 0:F].set(params["user_conv_w"].reshape(KD, F))
    convw = convw.at[0:KD, F:2 * F].set(params["item_conv_w"].reshape(KD, F))
    convw = convw.at[KD, 0:F].set(params["user_conv_b"][0])
    convw = convw.at[KD, F:2 * F].set(params["item_conv_b"][0])
    convw = convw.astype(jnp.bfloat16)                                        # (128, 2F)

    # packed lane-dense f32 parameter slab
    free_vec = jnp.concatenate([jnp.take(params["free_user_emb"], user, axis=0),
                                jnp.take(params["free_item_emb"], item, axis=0)], axis=1)
    wfm = jnp.concatenate([params["fm_V"], params["dec_fc_w"],
                           0.5 * jnp.sum(params["fm_V"] ** 2, axis=1, keepdims=True)],
                          axis=1)                                             # (2E, 12)
    base = (jnp.take(params["b_users"], user, axis=0)
            + jnp.take(params["b_items"], item, axis=0)
            + params["dec_fc_b"][0, 0] + AVG_RATING)                          # (B, 1)

    slab = jnp.zeros((SLAB_ROWS, LANES), jnp.float32)
    slab = slab.at[ROW_FCW:ROW_FCW + F, 0:E].set(params["user_fc_w"])
    slab = slab.at[ROW_FCW + F:ROW_FCW + 2 * F, E:2 * E].set(params["item_fc_w"])
    slab = slab.at[ROW_FREE:ROW_FREE + B, 0:2 * E].set(free_vec)
    slab = slab.at[ROW_FCB, 0:E].set(params["user_fc_b"][0])
    slab = slab.at[ROW_FCB, E:2 * E].set(params["item_fc_b"][0])
    slab = slab.at[ROW_WFM:ROW_WFM + 2 * E, 0:wfm.shape[1]].set(wfm)
    slab = slab.at[ROW_BASE:ROW_BASE + B, 0:1].set(base)
    slab = slab.at[ROW_LABEL:ROW_LABEL + B, 0:1].set(label[:, None].astype(jnp.float32))

    vmem = pltpu.MemorySpace.VMEM
    out = pl.pallas_call(
        deepconn_kernel,
        out_shape=jax.ShapeDtypeStruct((B, OUT_LANES), jnp.float32),
        in_specs=[pl.BlockSpec(memory_space=vmem)] * 3,
        out_specs=pl.BlockSpec(memory_space=vmem),
    )(docs, convw, slab)

    pred = out[:, 0]
    rating_loss = out[:, 1]
    obj_loss = out[0, 2]
    return obj_loss, rating_loss, pred


# ---------------- pure-JAX reference (for a sanity check) ----------------
def _reference_forward(params, user, item, label):
    # The reference decoder multiplies the encoder output by 0.0, so the live
    # prediction path only depends on the free embeddings / biases.
    x = jnp.concatenate([jnp.take(params["free_user_emb"], user, axis=0),
                         jnp.take(params["free_item_emb"], item, axis=0)], axis=1)
    lin = x @ params["dec_fc_w"] + params["dec_fc_b"]
    t1 = jnp.square(x @ params["fm_V"])
    t2 = jnp.square(x) @ jnp.square(params["fm_V"])
    fm = 0.5 * jnp.sum(t1 - t2, axis=1, keepdims=True)
    pred = (fm + lin + jnp.take(params["b_users"], user, axis=0)
            + jnp.take(params["b_items"], item, axis=0) + AVG_RATING)[:, 0]
    rl = jnp.square(pred - label)
    return jnp.sum(rl), rl, pred


if __name__ == "__main__":
    key = jax.random.PRNGKey(0)
    k_param, k_u, k_i, k_l, k_ud, k_id = jax.random.split(key, 6)
    params = init_params(k_param)

    user = jax.random.randint(k_u, (BATCH,), 0, NUM_USERS)
    item = jax.random.randint(k_i, (BATCH,), 0, NUM_ITEMS)
    label = jax.random.uniform(k_l, (BATCH,), jnp.float32, 1.0, 5.0)
    user_doc = jax.random.randint(k_ud, (BATCH, DOC_LEN), 0, VOCAB_SZ)
    item_doc = jax.random.randint(k_id, (BATCH, DOC_LEN), 0, VOCAB_SZ)

    fwd = jax.jit(deepconn_forward)
    obj_loss, rating_loss, pred = fwd(params, user, item, label, user_doc, item_doc)
    jax.block_until_ready((obj_loss, rating_loss, pred))

    assert pred.shape == (BATCH,)
    assert rating_loss.shape == (BATCH,)
    assert obj_loss.shape == ()

    ref_obj, ref_rl, ref_pred = _reference_forward(params, user, item, label)
    assert jnp.allclose(pred, ref_pred, rtol=1e-3, atol=1e-3)
    assert jnp.allclose(rating_loss, ref_rl, rtol=1e-3, atol=1e-3)
    assert jnp.allclose(obj_loss, ref_obj, rtol=1e-3, atol=1e-3)

    print("KERNEL_OK")
</pallas_src>

<mosaic_0001>
module attributes {stable_mosaic.version = 11 : i64} {
  func.func @deepconn_kernel(%arg0: memref<512x128xbf16, #tpu.memory_space<vmem>>, %arg1: memref<128x32xbf16, #tpu.memory_space<vmem>>, %arg2: memref<128x128xf32, #tpu.memory_space<vmem>>, %arg3: memref<8x128xf32, #tpu.memory_space<vmem>>) attributes {dimension_semantics = [], scalar_prefetch = 0 : i64, scratch_operands = 0 : i64, tpu.core_type = #tpu.core_type<tc>} {
    %c0 = arith.constant 0 : index
    %c0_0 = arith.constant 0 : index
    %0 = vector.load %arg0[%c0, %c0_0] : memref<512x128xbf16, #tpu.memory_space<vmem>>, vector<512x128xbf16>
    %c0_1 = arith.constant 0 : index
    %c0_2 = arith.constant 0 : index
    %1 = vector.load %arg1[%c0_1, %c0_2] : memref<128x32xbf16, #tpu.memory_space<vmem>>, vector<128x32xbf16>
    %cst = arith.constant dense<0.000000e+00> : vector<512x32xf32>
    %2 = tpu.matmul %0, %1, %cst {dimension_numbers = #tpu.dot_dimension_numbers<[1], [0], [0], [1], [0, 0, 1, 1], [], []>} : vector<512x128xbf16>, vector<128x32xbf16>, vector<512x32xf32> -> vector<512x32xf32>
    %cst_3 = arith.constant 0.000000e+00 : f32
    %3 = vector.broadcast %cst_3 : f32 to vector<512x32xf32>
    %4 = arith.maximumf %2, %3 : vector<512x32xf32>
    %5 = vector.shape_cast %4 : vector<512x32xf32> to vector<16x32x32xf32>
    %6 = tpu.iota {dimensions = array<i32: 1>} : vector<16x32x32xi32>
    %c30_i32 = arith.constant 30 : i32
    %7 = vector.broadcast %c30_i32 : i32 to vector<16x32x32xi32>
    %8 = arith.cmpi slt, %6, %7 : vector<16x32x32xi32>
    %cst_4 = arith.constant 0.000000e+00 : f32
    %9 = vector.broadcast %cst_4 : f32 to vector<16x32x32xf32>
    %10 = arith.select %8, %5, %9 : vector<16x32x32xi1>, vector<16x32x32xf32>
    %cst_5 = arith.constant dense<0xFF800000> : vector<16x32xf32>
    %11 = vector.multi_reduction <maximumf>, %10, %cst_5 [1] : vector<16x32x32xf32> to vector<16x32xf32>
    %c0_6 = arith.constant 0 : index
    %c0_7 = arith.constant 0 : index
    %12 = vector.load %arg2[%c0_6, %c0_7] : memref<128x128xf32, #tpu.memory_space<vmem>>, vector<32x64xf32>
    %c40 = arith.constant 40 : index
    %c0_8 = arith.constant 0 : index
    %13 = vector.load %arg2[%c40, %c0_8] : memref<128x128xf32, #tpu.memory_space<vmem>>, vector<1x64xf32>
    %cst_9 = arith.constant dense<0.000000e+00> : vector<16x64xf32>
    %14 = tpu.matmul %11, %12, %cst_9 {dimension_numbers = #tpu.dot_dimension_numbers<[1], [0], [0], [1], [0, 0, 1, 1], [], []>} : vector<16x32xf32>, vector<32x64xf32>, vector<16x64xf32> -> vector<16x64xf32>
    %15 = vector.broadcast %13 : vector<1x64xf32> to vector<16x64xf32>
    %16 = arith.addf %14, %15 : vector<16x64xf32>
    %17 = tpu.iota {dimensions = array<i32: 1>} : vector<8x64xi32>
    %c32_i32 = arith.constant 32 : i32
    %18 = vector.broadcast %c32_i32 : i32 to vector<8x64xi32>
    %19 = arith.cmpi slt, %17, %18 : vector<8x64xi32>
    %20 = vector.extract_strided_slice %16 {offsets = [0, 0], sizes = [8, 64], strides = [1, 1]} : vector<16x64xf32> to vector<8x64xf32>
    %21 = vector.extract_strided_slice %16 {offsets = [8, 0], sizes = [8, 64], strides = [1, 1]} : vector<16x64xf32> to vector<8x64xf32>
    %22 = arith.select %19, %20, %21 : vector<8x64xi1>, vector<8x64xf32>
    %c32 = arith.constant 32 : index
    %c0_10 = arith.constant 0 : index
    %23 = vector.load %arg2[%c32, %c0_10] : memref<128x128xf32, #tpu.memory_space<vmem>>, vector<8x64xf32>
    %cst_11 = arith.constant 0.000000e+00 : f32
    %24 = vector.broadcast %cst_11 : f32 to vector<8x64xf32>
    %25 = arith.mulf %24, %22 : vector<8x64xf32>
    %26 = arith.addf %25, %23 : vector<8x64xf32>
    %c48 = arith.constant 48 : index
    %c0_12 = arith.constant 0 : index
    %27 = vector.load %arg2[%c48, %c0_12] : memref<128x128xf32, #tpu.memory_space<vmem>>, vector<64x16xf32>
    %28 = arith.mulf %26, %26 : vector<8x64xf32>
    %29 = tpu.concatenate %26, %28 in 0 : vector<8x64xf32>, vector<8x64xf32> -> vector<16x64xf32>
    %cst_13 = arith.constant dense<0.000000e+00> : vector<16x16xf32>
    %30 = tpu.matmul %29, %27, %cst_13 {dimension_numbers = #tpu.dot_dimension_numbers<[1], [0], [0], [1], [0, 0, 1, 1], [], []>} : vector<16x64xf32>, vector<64x16xf32>, vector<16x16xf32> -> vector<16x16xf32>
    %31 = vector.extract_strided_slice %30 {offsets = [0, 0], sizes = [8, 16], strides = [1, 1]} : vector<16x16xf32> to vector<8x16xf32>
    %32 = vector.extract_strided_slice %30 {offsets = [8, 0], sizes = [8, 16], strides = [1, 1]} : vector<16x16xf32> to vector<8x16xf32>
    %33 = tpu.iota {dimensions = array<i32: 1>} : vector<8x16xi32>
    %c10_i32 = arith.constant 10 : i32
    %34 = vector.broadcast %c10_i32 : i32 to vector<8x16xi32>
    %35 = arith.cmpi slt, %33, %34 : vector<8x16xi32>
    %cst_14 = arith.constant 5.000000e-01 : f32
    %36 = vector.broadcast %cst_14 : f32 to vector<8x16xf32>
    %37 = arith.mulf %36, %31 : vector<8x16xf32>
    %38 = arith.mulf %37, %31 : vector<8x16xf32>
    %c10_i32_15 = arith.constant 10 : i32
    %39 = vector.broadcast %c10_i32_15 : i32 to vector<8x16xi32>
    %40 = arith.cmpi eq, %33, %39 : vector<8x16xi32>
    %c11_i32 = arith.constant 11 : i32
    %41 = vector.broadcast %c11_i32 : i32 to vector<8x16xi32>
    %42 = arith.cmpi eq, %33, %41 : vector<8x16xi32>
    %cst_16 = arith.constant 0.000000e+00 : f32
    %43 = vector.broadcast %cst_16 : f32 to vector<8x16xf32>
    %44 = arith.subf %43, %32 : vector<8x16xf32>
    %cst_17 = arith.constant 0.000000e+00 : f32
    %45 = vector.broadcast %cst_17 : f32 to vector<8x16xf32>
    %46 = arith.select %42, %44, %45 : vector<8x16xi1>, vector<8x16xf32>
    %47 = arith.select %40, %31, %46 : vector<8x16xi1>, vector<8x16xf32>
    %48 = arith.select %35, %38, %47 : vector<8x16xi1>, vector<8x16xf32>
    %cst_18 = arith.constant dense<0.000000e+00> : vector<8xf32>
    %49 = vector.multi_reduction <add>, %48, %cst_18 [1] : vector<8x16xf32> to vector<8xf32>
    %50 = vector.shape_cast %49 : vector<8xf32> to vector<8x1xf32>
    %c112 = arith.constant 112 : index
    %c0_19 = arith.constant 0 : index
    %51 = vector.load %arg2[%c112, %c0_19] : memref<128x128xf32, #tpu.memory_space<vmem>>, vector<8x1xf32>
    %c120 = arith.constant 120 : index
    %c0_20 = arith.constant 0 : index
    %52 = vector.load %arg2[%c120, %c0_20] : memref<128x128xf32, #tpu.memory_space<vmem>>, vector<8x1xf32>
    %53 = arith.addf %50, %51 : vector<8x1xf32>
    %54 = arith.subf %53, %52 : vector<8x1xf32>
    %55 = arith.mulf %54, %54 : vector<8x1xf32>
    %cst_21 = arith.constant dense<0.000000e+00> : vector<1xf32>
    %56 = vector.multi_reduction <add>, %55, %cst_21 [0] : vector<8x1xf32> to vector<1xf32>
    %57 = vector.shape_cast %56 : vector<1xf32> to vector<1x1xf32>
    %58 = tpu.iota {dimensions = array<i32: 1>} : vector<8x128xi32>
    %c0_i32 = arith.constant 0 : i32
    %59 = vector.broadcast %c0_i32 : i32 to vector<8x128xi32>
    %60 = arith.cmpi eq, %58, %59 : vector<8x128xi32>
    %c1_i32 = arith.constant 1 : i32
    %61 = vector.broadcast %c1_i32 : i32 to vector<8x128xi32>
    %62 = arith.cmpi eq, %58, %61 : vector<8x128xi32>
    %c2_i32 = arith.constant 2 : i32
    %63 = vector.broadcast %c2_i32 : i32 to vector<8x128xi32>
    %64 = arith.cmpi eq, %58, %63 : vector<8x128xi32>
    %cst_22 = arith.constant 0.000000e+00 : f32
    %65 = vector.shape_cast %57 : vector<1x1xf32> to vector<1x1xf32>
    %66 = vector.broadcast %65 : vector<1x1xf32> to vector<8x128xf32>
    %67 = vector.broadcast %cst_22 : f32 to vector<8x128xf32>
    %68 = arith.select %64, %66, %67 : vector<8x128xi1>, vector<8x128xf32>
    %69 = vector.shape_cast %55 : vector<8x1xf32> to vector<8x1xf32>
    %70 = vector.broadcast %69 : vector<8x1xf32> to vector<8x128xf32>
    %71 = arith.select %62, %70, %68 : vector<8x128xi1>, vector<8x128xf32>
    %72 = vector.shape_cast %53 : vector<8x1xf32> to vector<8x1xf32>
    %73 = vector.broadcast %72 : vector<8x1xf32> to vector<8x128xf32>
    %74 = arith.select %60, %73, %71 : vector<8x128xi1>, vector<8x128xf32>
    %c0_23 = arith.constant 0 : index
    %c0_24 = arith.constant 0 : index
    %75 = vector.load %arg3[%c0_23, %c0_24] : memref<8x128xf32, #tpu.memory_space<vmem>>, vector<8x128xf32>
    tpu.vector_store %arg3[%c0_23, %c0_24], %74 {strides = array<i32>} : memref<8x128xf32, #tpu.memory_space<vmem>>, vector<8x128xf32>,
    return
  }
}

</mosaic_0001>

<llo_original>
// kernel: deepconn_forward.1
$region0: #{deepconn_forward.1}
  #allocation0 [shape = 'u32[]', space=smem, size = 0x4, offset = 0x4, fixed_abs, tag = 'smem constant byte address 0x4 - core index']
  #allocation1 [shape = 'u32[72,128]{1,0:T(1,128)}', space=vmem, size = 0x9000, scoped, tag = 'internal scratch']
  %s0 = inlined_call_operand.vmem [shape: bf16[512,128], index: 0, kind: input, shape index: {}]
  %s1 = inlined_call_operand.vmem [shape: bf16[128,32], index: 1, kind: input, shape index: {}]
  %s2 = inlined_call_operand.vmem [shape: f32[128,128], index: 2, kind: input, shape index: {}]
  %s3 = inlined_call_operand.vmem [shape: f32[8,128], index: 3, kind: output, shape index: {}]
  %s4 = sld [smem:[#allocation0]]
  $region22: #{deepconn_forward.1} parent=0
    _
  %s6 = ssub.s32 1, %s4
  %s7 = scalar_select 0, %s6, %s4
  // Predicated region
  $region2: #{deepconn_forward.1} parent=0 // pred_check
    _
  $region3: #{deepconn_forward.1} parent=0 // pred_check_branch
    %9 = sbr.rel (0) target = $region5
  $region4: #{deepconn_forward.1} parent=0 // pred_region
    _
  $region5: #{deepconn_forward.1} parent=0 // pred_fallthru
    _
  // Predicated region
  $region6: #{deepconn_forward.1} parent=0 // pred_check
    _
  $region7: #{deepconn_forward.1} parent=0 // pred_check_branch
    %11 = sbr.rel (0) target = $region9
  $region8: #{deepconn_forward.1} parent=0 // pred_region
    _
  $region9: #{deepconn_forward.1} parent=0 // pred_fallthru
    _
  // Predicated region
  $region10: #{deepconn_forward.1} parent=0 // pred_check
    _
  $region11: #{deepconn_forward.1} parent=0 // pred_check_branch
    %13 = sbr.rel (0) target = $region13
  $region12: #{deepconn_forward.1} parent=0 // pred_region
    _
  $region13: #{deepconn_forward.1} parent=0 // pred_fallthru
    _
  %v14 = vld [vmem:[%s0] sm:$0xf]
  %v15 = vld [vmem:[%s0 + $0x4] sm:$0xf]
  %v16 = vld [vmem:[%s0 + $0x8] sm:$0xf]
  %v17 = vld [vmem:[%s0 + $0xc] sm:$0xf]
  %v18 = vld [vmem:[%s0 + $0x10] sm:$0xf]
  %v19 = vld [vmem:[%s0 + $0x14] sm:$0xf]
  %v20 = vld [vmem:[%s0 + $0x18] sm:$0xf]
  %v21 = vld [vmem:[%s0 + $0x1c] sm:$0xf]
  %v22 = vld [vmem:[%s0 + $0x20] sm:$0xf]
  %v23 = vld [vmem:[%s0 + $0x24] sm:$0xf]
  %v24 = vld [vmem:[%s0 + $0x28] sm:$0xf]
  %v25 = vld [vmem:[%s0 + $0x2c] sm:$0xf]
  %v26 = vld [vmem:[%s0 + $0x30] sm:$0xf]
  %v27 = vld [vmem:[%s0 + $0x34] sm:$0xf]
  %v28 = vld [vmem:[%s0 + $0x38] sm:$0xf]
  %v29 = vld [vmem:[%s0 + $0x3c] sm:$0xf]
  %v30 = vld [vmem:[%s0 + $0x40] sm:$0xf]
  %v31 = vld [vmem:[%s0 + $0x44] sm:$0xf]
  %v32 = vld [vmem:[%s0 + $0x48] sm:$0xf]
  %v33 = vld [vmem:[%s0 + $0x4c] sm:$0xf]
  %v34 = vld [vmem:[%s0 + $0x50] sm:$0xf]
  %v35 = vld [vmem:[%s0 + $0x54] sm:$0xf]
  %v36 = vld [vmem:[%s0 + $0x58] sm:$0xf]
  %v37 = vld [vmem:[%s0 + $0x5c] sm:$0xf]
  %v38 = vld [vmem:[%s0 + $0x60] sm:$0xf]
  %v39 = vld [vmem:[%s0 + $0x64] sm:$0xf]
  %v40 = vld [vmem:[%s0 + $0x68] sm:$0xf]
  %v41 = vld [vmem:[%s0 + $0x6c] sm:$0xf]
  %v42 = vld [vmem:[%s0 + $0x70] sm:$0xf]
  %v43 = vld [vmem:[%s0 + $0x74] sm:$0xf]
  %v44 = vld [vmem:[%s0 + $0x78] sm:$0xf]
  %v45 = vld [vmem:[%s0 + $0x7c] sm:$0xf]
  %v46 = vld [vmem:[%s0 + $0x80] sm:$0xf]
  %v47 = vld [vmem:[%s0 + $0x84] sm:$0xf]
  %v48 = vld [vmem:[%s0 + $0x88] sm:$0xf]
  %v49 = vld [vmem:[%s0 + $0x8c] sm:$0xf]
  %v50 = vld [vmem:[%s0 + $0x90] sm:$0xf]
  %v51 = vld [vmem:[%s0 + $0x94] sm:$0xf]
  %v52 = vld [vmem:[%s0 + $0x98] sm:$0xf]
  %v53 = vld [vmem:[%s0 + $0x9c] sm:$0xf]
  %v54 = vld [vmem:[%s0 + $0xa0] sm:$0xf]
  %v55 = vld [vmem:[%s0 + $0xa4] sm:$0xf]
  %v56 = vld [vmem:[%s0 + $0xa8] sm:$0xf]
  %v57 = vld [vmem:[%s0 + $0xac] sm:$0xf]
  %v58 = vld [vmem:[%s0 + $0xb0] sm:$0xf]
  %v59 = vld [vmem:[%s0 + $0xb4] sm:$0xf]
  %v60 = vld [vmem:[%s0 + $0xb8] sm:$0xf]
  %v61 = vld [vmem:[%s0 + $0xbc] sm:$0xf]
  %v62 = vld [vmem:[%s0 + $0xc0] sm:$0xf]
  %v63 = vld [vmem:[%s0 + $0xc4] sm:$0xf]
  %v64 = vld [vmem:[%s0 + $0xc8] sm:$0xf]
  %v65 = vld [vmem:[%s0 + $0xcc] sm:$0xf]
  %v66 = vld [vmem:[%s0 + $0xd0] sm:$0xf]
  %v67 = vld [vmem:[%s0 + $0xd4] sm:$0xf]
  %v68 = vld [vmem:[%s0 + $0xd8] sm:$0xf]
  %v69 = vld [vmem:[%s0 + $0xdc] sm:$0xf]
  %v70 = vld [vmem:[%s0 + $0xe0] sm:$0xf]
  %v71 = vld [vmem:[%s0 + $0xe4] sm:$0xf]
  %v72 = vld [vmem:[%s0 + $0xe8] sm:$0xf]
  %v73 = vld [vmem:[%s0 + $0xec] sm:$0xf]
  %v74 = vld [vmem:[%s0 + $0xf0] sm:$0xf]
  %v75 = vld [vmem:[%s0 + $0xf4] sm:$0xf]
  %v76 = vld [vmem:[%s0 + $0xf8] sm:$0xf]
  %v77 = vld [vmem:[%s0 + $0xfc] sm:$0xf]
  %v78 = vld [vmem:[%s1] sm:$0xf]
  %v79 = vld [vmem:[%s1 + $0x4] sm:$0xf]
  %v80 = vld [vmem:[%s1 + $0x8] sm:$0xf]
  %v81 = vld [vmem:[%s1 + $0xc] sm:$0xf]
  %v82 = vld [vmem:[%s1 + $0x10] sm:$0xf]
  %v83 = vld [vmem:[%s1 + $0x14] sm:$0xf]
  %v84 = vld [vmem:[%s1 + $0x18] sm:$0xf]
  %v85 = vld [vmem:[%s1 + $0x1c] sm:$0xf]
  %v86 = vld [vmem:[%s1 + $0x20] sm:$0xf]
  %v87 = vld [vmem:[%s1 + $0x24] sm:$0xf]
  %v88 = vld [vmem:[%s1 + $0x28] sm:$0xf]
  %v89 = vld [vmem:[%s1 + $0x2c] sm:$0xf]
  %v90 = vld [vmem:[%s1 + $0x30] sm:$0xf]
  %v91 = vld [vmem:[%s1 + $0x34] sm:$0xf]
  %v92 = vld [vmem:[%s1 + $0x38] sm:$0xf]
  %v93 = vld [vmem:[%s1 + $0x3c] sm:$0xf]
  %v158 = vunpack.c.l.b16 %v14
  %v159 = vunpack.c.l.b16 %v15
  %v160 = vunpack.c.l.b16 %v16
  %v161 = vunpack.c.l.b16 %v17
  %v162 = vunpack.c.l.b16 %v18
  %v163 = vunpack.c.l.b16 %v19
  %v164 = vunpack.c.l.b16 %v20
  %v165 = vunpack.c.l.b16 %v21
  %v166 = vunpack.c.l.b16 %v22
  %v167 = vunpack.c.l.b16 %v23
  %v168 = vunpack.c.l.b16 %v24
  %v169 = vunpack.c.l.b16 %v25
  %v170 = vunpack.c.l.b16 %v26
  %v171 = vunpack.c.l.b16 %v27
  %v172 = vunpack.c.l.b16 %v28
  %v173 = vunpack.c.l.b16 %v29
  %v174 = vunpack.c.l.b16 %v30
  %v175 = vunpack.c.l.b16 %v31
  %v176 = vunpack.c.l.b16 %v32
  %v177 = vunpack.c.l.b16 %v33
  %v178 = vunpack.c.l.b16 %v34
  %v179 = vunpack.c.l.b16 %v35
  %v180 = vunpack.c.l.b16 %v36
  %v181 = vunpack.c.l.b16 %v37
  %v182 = vunpack.c.l.b16 %v38
  %v183 = vunpack.c.l.b16 %v39
  %v184 = vunpack.c.l.b16 %v40
  %v185 = vunpack.c.l.b16 %v41
  %v186 = vunpack.c.l.b16 %v42
  %v187 = vunpack.c.l.b16 %v43
  %v188 = vunpack.c.l.b16 %v44
  %v189 = vunpack.c.l.b16 %v45
  %v190 = vunpack.c.l.b16 %v46
  %v191 = vunpack.c.l.b16 %v47
  %v192 = vunpack.c.l.b16 %v48
  %v193 = vunpack.c.l.b16 %v49
  %v194 = vunpack.c.l.b16 %v50
  %v195 = vunpack.c.l.b16 %v51
  %v196 = vunpack.c.l.b16 %v52
  %v197 = vunpack.c.l.b16 %v53
  %v198 = vunpack.c.l.b16 %v54
  %v199 = vunpack.c.l.b16 %v55
  %v200 = vunpack.c.l.b16 %v56
  %v201 = vunpack.c.l.b16 %v57
  %v202 = vunpack.c.l.b16 %v58
  %v203 = vunpack.c.l.b16 %v59
  %v204 = vunpack.c.l.b16 %v60
  %v205 = vunpack.c.l.b16 %v61
  %v206 = vunpack.c.l.b16 %v62
  %v207 = vunpack.c.l.b16 %v63
  %v208 = vunpack.c.l.b16 %v64
  %v209 = vunpack.c.l.b16 %v65
  %v210 = vunpack.c.l.b16 %v66
  %v211 = vunpack.c.l.b16 %v67
  %v212 = vunpack.c.l.b16 %v68
  %v213 = vunpack.c.l.b16 %v69
  %v214 = vunpack.c.l.b16 %v70
  %v215 = vunpack.c.l.b16 %v71
  %v216 = vunpack.c.l.b16 %v72
  %v217 = vunpack.c.l.b16 %v73
  %v218 = vunpack.c.l.b16 %v74
  %v219 = vunpack.c.l.b16 %v75
  %v220 = vunpack.c.l.b16 %v76
  %v221 = vunpack.c.l.b16 %v77
  %v222 = vpack.c.b16 %v159, %v158
  %v223 = vpack.c.b16 %v161, %v160
  %v224 = vpack.c.b16 %v163, %v162
  %v225 = vpack.c.b16 %v165, %v164
  %v226 = vpack.c.b16 %v167, %v166
  %v227 = vpack.c.b16 %v169, %v168
  %v228 = vpack.c.b16 %v171, %v170
  %v229 = vpack.c.b16 %v173, %v172
  %v230 = vpack.c.b16 %v175, %v174
  %v231 = vpack.c.b16 %v177, %v176
  %v232 = vpack.c.b16 %v179, %v178
  %v233 = vpack.c.b16 %v181, %v180
  %v234 = vpack.c.b16 %v183, %v182
  %v235 = vpack.c.b16 %v185, %v184
  %v236 = vpack.c.b16 %v187, %v186
  %v237 = vpack.c.b16 %v189, %v188
  %v238 = vpack.c.b16 %v191, %v190
  %v239 = vpack.c.b16 %v193, %v192
  %v240 = vpack.c.b16 %v195, %v194
  %v241 = vpack.c.b16 %v197, %v196
  %v242 = vpack.c.b16 %v199, %v198
  %v243 = vpack.c.b16 %v201, %v200
  %v244 = vpack.c.b16 %v203, %v202
  %v245 = vpack.c.b16 %v205, %v204
  %v246 = vpack.c.b16 %v207, %v206
  %v247 = vpack.c.b16 %v209, %v208
  %v248 = vpack.c.b16 %v211, %v210
  %v249 = vpack.c.b16 %v213, %v212
  %v250 = vpack.c.b16 %v215, %v214
  %v251 = vpack.c.b16 %v217, %v216
  %v252 = vpack.c.b16 %v219, %v218
  %v253 = vpack.c.b16 %v221, %v220
  %v302 = vunpack.c.l.b16 %v78
  %v303 = vunpack.c.l.b16 %v79
  %v304 = vunpack.c.l.b16 %v80
  %v305 = vunpack.c.l.b16 %v81
  %v306 = vunpack.c.l.b16 %v82
  %v307 = vunpack.c.l.b16 %v83
  %v308 = vunpack.c.l.b16 %v84
  %v309 = vunpack.c.l.b16 %v85
  %v310 = vunpack.c.l.b16 %v86
  %v311 = vunpack.c.l.b16 %v87
  %v312 = vunpack.c.l.b16 %v88
  %v313 = vunpack.c.l.b16 %v89
  %v314 = vunpack.c.l.b16 %v90
  %v315 = vunpack.c.l.b16 %v91
  %v316 = vunpack.c.l.b16 %v92
  %v317 = vunpack.c.l.b16 %v93
  %v318 = vpack.c.b16 %v303, %v302
  %v319 = vpack.c.b16 %v305, %v304
  %v320 = vpack.c.b16 %v307, %v306
  %v321 = vpack.c.b16 %v309, %v308
  %v322 = vpack.c.b16 %v311, %v310
  %v323 = vpack.c.b16 %v313, %v312
  %v324 = vpack.c.b16 %v315, %v314
  %v325 = vpack.c.b16 %v317, %v316
  %334 = vmatpush.bf16.msra.mxu0 %v325
  %335 = vmatpush.bf16.msra.mxu0 %v324
  %336 = vmatpush.bf16.msra.mxu0 %v323
  %337 = vmatpush.bf16.msra.mxu0 %v322
  %338 = vmatpush.bf16.msra.mxu0 %v321
  %339 = vmatpush.bf16.msra.mxu0 %v320
  %340 = vmatpush.bf16.msra.mxu0 %v319
  %341 = vmatpush.bf16.msra.mxu0 %v318
  %342 = vmatmul.bf16.gmra.mxu0 %v222
  %v343 = vpop.f32.mrf.mxu0
  %v344 = vadd.f32 0.0, %v343
  %v345 = vpop.f32.mrf.mxu0
  %v346 = vadd.f32 0.0, %v345
  %347 = vmatmul.bf16.gmra.mxu0 %v223
  %v348 = vpop.f32.mrf.mxu0
  %v349 = vadd.f32 0.0, %v348
  %v350 = vpop.f32.mrf.mxu0
  %v351 = vadd.f32 0.0, %v350
  %352 = vmatmul.bf16.gmra.mxu0 %v224
  %v353 = vpop.f32.mrf.mxu0
  %v354 = vadd.f32 0.0, %v353
  %v355 = vpop.f32.mrf.mxu0
  %v356 = vadd.f32 0.0, %v355
  %357 = vmatmul.bf16.gmra.mxu0 %v225
  %v358 = vpop.f32.mrf.mxu0
  %v359 = vadd.f32 0.0, %v358
  %v360 = vpop.f32.mrf.mxu0
  %v361 = vadd.f32 0.0, %v360
  %362 = vmatmul.bf16.gmra.mxu0 %v226
  %v363 = vpop.f32.mrf.mxu0
  %v364 = vadd.f32 0.0, %v363
  %v365 = vpop.f32.mrf.mxu0
  %v366 = vadd.f32 0.0, %v365
  %367 = vmatmul.bf16.gmra.mxu0 %v227
  %v368 = vpop.f32.mrf.mxu0
  %v369 = vadd.f32 0.0, %v368
  %v370 = vpop.f32.mrf.mxu0
  %v371 = vadd.f32 0.0, %v370
  %372 = vmatmul.bf16.gmra.mxu0 %v228
  %v373 = vpop.f32.mrf.mxu0
  %v374 = vadd.f32 0.0, %v373
  %v375 = vpop.f32.mrf.mxu0
  %v376 = vadd.f32 0.0, %v375
  %377 = vmatmul.bf16.gmra.mxu0 %v229
  %v378 = vpop.f32.mrf.mxu0
  %v379 = vadd.f32 0.0, %v378
  %v380 = vpop.f32.mrf.mxu0
  %v381 = vadd.f32 0.0, %v380
  %382 = vmatmul.bf16.gmra.mxu0 %v230
  %v383 = vpop.f32.mrf.mxu0
  %v384 = vadd.f32 0.0, %v383
  %v385 = vpop.f32.mrf.mxu0
  %v386 = vadd.f32 0.0, %v385
  %387 = vmatmul.bf16.gmra.mxu0 %v231
  %v388 = vpop.f32.mrf.mxu0
  %v389 = vadd.f32 0.0, %v388
  %v390 = vpop.f32.mrf.mxu0
  %v391 = vadd.f32 0.0, %v390
  %392 = vmatmul.bf16.gmra.mxu0 %v232
  %v393 = vpop.f32.mrf.mxu0
  %v394 = vadd.f32 0.0, %v393
  %v395 = vpop.f32.mrf.mxu0
  %v396 = vadd.f32 0.0, %v395
  %397 = vmatmul.bf16.gmra.mxu0 %v233
  %v398 = vpop.f32.mrf.mxu0
  %v399 = vadd.f32 0.0, %v398
  %v400 = vpop.f32.mrf.mxu0
  %v401 = vadd.f32 0.0, %v400
  %402 = vmatmul.bf16.gmra.mxu0 %v234
  %v403 = vpop.f32.mrf.mxu0
  %v404 = vadd.f32 0.0, %v403
  %v405 = vpop.f32.mrf.mxu0
  %v406 = vadd.f32 0.0, %v405
  %407 = vmatmul.bf16.gmra.mxu0 %v235
  %v408 = vpop.f32.mrf.mxu0
  %v409 = vadd.f32 0.0, %v408
  %v410 = vpop.f32.mrf.mxu0
  %v411 = vadd.f32 0.0, %v410
  %412 = vmatmul.bf16.gmra.mxu0 %v236
  %v413 = vpop.f32.mrf.mxu0
  %v414 = vadd.f32 0.0, %v413
  %v415 = vpop.f32.mrf.mxu0
  %v416 = vadd.f32 0.0, %v415
  %417 = vmatmul.bf16.gmra.mxu0 %v237
  %v418 = vpop.f32.mrf.mxu0
  %v419 = vadd.f32 0.0, %v418
  %v420 = vpop.f32.mrf.mxu0
  %v421 = vadd.f32 0.0, %v420
  %422 = vmatmul.bf16.gmra.mxu0 %v238
  %v423 = vpop.f32.mrf.mxu0
  %v424 = vadd.f32 0.0, %v423
  %v425 = vpop.f32.mrf.mxu0
  %v426 = vadd.f32 0.0, %v425
  %427 = vmatmul.bf16.gmra.mxu0 %v239
  %v428 = vpop.f32.mrf.mxu0
  %v429 = vadd.f32 0.0, %v428
  %v430 = vpop.f32.mrf.mxu0
  %v431 = vadd.f32 0.0, %v430
  %432 = vmatmul.bf16.gmra.mxu0 %v240
  %v433 = vpop.f32.mrf.mxu0
  %v434 = vadd.f32 0.0, %v433
  %v435 = vpop.f32.mrf.mxu0
  %v436 = vadd.f32 0.0, %v435
  %437 = vmatmul.bf16.gmra.mxu0 %v241
  %v438 = vpop.f32.mrf.mxu0
  %v439 = vadd.f32 0.0, %v438
  %v440 = vpop.f32.mrf.mxu0
  %v441 = vadd.f32 0.0, %v440
  %442 = vmatmul.bf16.gmra.mxu0 %v242
  %v443 = vpop.f32.mrf.mxu0
  %v444 = vadd.f32 0.0, %v443
  %v445 = vpop.f32.mrf.mxu0
  %v446 = vadd.f32 0.0, %v445
  %447 = vmatmul.bf16.gmra.mxu0 %v243
  %v448 = vpop.f32.mrf.mxu0
  %v449 = vadd.f32 0.0, %v448
  %v450 = vpop.f32.mrf.mxu0
  %v451 = vadd.f32 0.0, %v450
  %452 = vmatmul.bf16.gmra.mxu0 %v244
  %v453 = vpop.f32.mrf.mxu0
  %v454 = vadd.f32 0.0, %v453
  %v455 = vpop.f32.mrf.mxu0
  %v456 = vadd.f32 0.0, %v455
  %457 = vmatmul.bf16.gmra.mxu0 %v245
  %v458 = vpop.f32.mrf.mxu0
  %v459 = vadd.f32 0.0, %v458
  %v460 = vpop.f32.mrf.mxu0
  %v461 = vadd.f32 0.0, %v460
  %462 = vmatmul.bf16.gmra.mxu0 %v246
  %v463 = vpop.f32.mrf.mxu0
  %v464 = vadd.f32 0.0, %v463
  %v465 = vpop.f32.mrf.mxu0
  %v466 = vadd.f32 0.0, %v465
  %467 = vmatmul.bf16.gmra.mxu0 %v247
  %v468 = vpop.f32.mrf.mxu0
  %v469 = vadd.f32 0.0, %v468
  %v470 = vpop.f32.mrf.mxu0
  %v471 = vadd.f32 0.0, %v470
  %472 = vmatmul.bf16.gmra.mxu0 %v248
  %v473 = vpop.f32.mrf.mxu0
  %v474 = vadd.f32 0.0, %v473
  %v475 = vpop.f32.mrf.mxu0
  %v476 = vadd.f32 0.0, %v475
  %477 = vmatmul.bf16.gmra.mxu0 %v249
  %v478 = vpop.f32.mrf.mxu0
  %v479 = vadd.f32 0.0, %v478
  %v480 = vpop.f32.mrf.mxu0
  %v481 = vadd.f32 0.0, %v480
  %482 = vmatmul.bf16.gmra.mxu0 %v250
  %v483 = vpop.f32.mrf.mxu0
  %v484 = vadd.f32 0.0, %v483
  %v485 = vpop.f32.mrf.mxu0
  %v486 = vadd.f32 0.0, %v485
  %487 = vmatmul.bf16.gmra.mxu0 %v251
  %v488 = vpop.f32.mrf.mxu0
  %v489 = vadd.f32 0.0, %v488
  %v490 = vpop.f32.mrf.mxu0
  %v491 = vadd.f32 0.0, %v490
  %492 = vmatmul.bf16.gmra.mxu0 %v252
  %v493 = vpop.f32.mrf.mxu0
  %v494 = vadd.f32 0.0, %v493
  %v495 = vpop.f32.mrf.mxu0
  %v496 = vadd.f32 0.0, %v495
  %497 = vmatmul.bf16.gmra.mxu0 %v253
  %v498 = vpop.f32.mrf.mxu0
  %v499 = vadd.f32 0.0, %v498
  %v500 = vpop.f32.mrf.mxu0
  %v501 = vadd.f32 0.0, %v500
  %502 = vdwg.mxu0
  %v503 = vmax.f32 %v344, 0.0
  %v504 = vmax.f32 %v346, 0.0
  %v505 = vmax.f32 %v349, 0.0
  %v506 = vmax.f32 %v351, 0.0
  %v507 = vmax.f32 %v354, 0.0
  %v508 = vmax.f32 %v356, 0.0
  %v509 = vmax.f32 %v359, 0.0
  %v510 = vmax.f32 %v361, 0.0
  %v511 = vmax.f32 %v364, 0.0
  %v512 = vmax.f32 %v366, 0.0
  %v513 = vmax.f32 %v369, 0.0
  %v514 = vmax.f32 %v371, 0.0
  %v515 = vmax.f32 %v374, 0.0
  %v516 = vmax.f32 %v376, 0.0
  %v517 = vmax.f32 %v379, 0.0
  %v518 = vmax.f32 %v381, 0.0
  %v519 = vmax.f32 %v384, 0.0
  %v520 = vmax.f32 %v386, 0.0
  %v521 = vmax.f32 %v389, 0.0
  %v522 = vmax.f32 %v391, 0.0
  %v523 = vmax.f32 %v394, 0.0
  %v524 = vmax.f32 %v396, 0.0
  %v525 = vmax.f32 %v399, 0.0
  %v526 = vmax.f32 %v401, 0.0
  %v527 = vmax.f32 %v404, 0.0
  %v528 = vmax.f32 %v406, 0.0
  %v529 = vmax.f32 %v409, 0.0
  %v530 = vmax.f32 %v411, 0.0
  %v531 = vmax.f32 %v414, 0.0
  %v532 = vmax.f32 %v416, 0.0
  %v533 = vmax.f32 %v419, 0.0
  %v534 = vmax.f32 %v421, 0.0
  %v535 = vmax.f32 %v424, 0.0
  %v536 = vmax.f32 %v426, 0.0
  %v537 = vmax.f32 %v429, 0.0
  %v538 = vmax.f32 %v431, 0.0
  %v539 = vmax.f32 %v434, 0.0
  %v540 = vmax.f32 %v436, 0.0
  %v541 = vmax.f32 %v439, 0.0
  %v542 = vmax.f32 %v441, 0.0
  %v543 = vmax.f32 %v444, 0.0
  %v544 = vmax.f32 %v446, 0.0
  %v545 = vmax.f32 %v449, 0.0
  %v546 = vmax.f32 %v451, 0.0
  %v547 = vmax.f32 %v454, 0.0
  %v548 = vmax.f32 %v456, 0.0
  %v549 = vmax.f32 %v459, 0.0
  %v550 = vmax.f32 %v461, 0.0
  %v551 = vmax.f32 %v464, 0.0
  %v552 = vmax.f32 %v466, 0.0
  %v553 = vmax.f32 %v469, 0.0
  %v554 = vmax.f32 %v471, 0.0
  %v555 = vmax.f32 %v474, 0.0
  %v556 = vmax.f32 %v476, 0.0
  %v557 = vmax.f32 %v479, 0.0
  %v558 = vmax.f32 %v481, 0.0
  %v559 = vmax.f32 %v484, 0.0
  %v560 = vmax.f32 %v486, 0.0
  %v561 = vmax.f32 %v489, 0.0
  %v562 = vmax.f32 %v491, 0.0
  %v563 = vmax.f32 %v494, 0.0
  %v564 = vmax.f32 %v496, 0.0
  %v565 = vmax.f32 %v499, 0.0
  %v566 = vmax.f32 %v501, 0.0
  %v567 = vlaneseq
  %v568 = vshrl.u32 %v567, 7
  %v569 = vadd.s32 %v568, 8
  %v570 = vadd.s32 %v568, 16
  %v571 = vadd.s32 %v568, 24
  %vm572 = vcmp.lt.s32.totalorder %v568, 30
  %vm573 = vcmp.lt.s32.totalorder %v569, 30
  %vm574 = vcmp.lt.s32.totalorder %v570, 30
  %vm575 = vcmp.lt.s32.totalorder %v571, 30
  %v576 = vsel %vm572, %v503, 0.0
  %v577 = vsel %vm573, %v504, 0.0
  %v578 = vsel %vm574, %v505, 0.0
  %v579 = vsel %vm575, %v506, 0.0
  %v580 = vsel %vm572, %v507, 0.0
  %v581 = vsel %vm573, %v508, 0.0
  %v582 = vsel %vm574, %v509, 0.0
  %v583 = vsel %vm575, %v510, 0.0
  %v584 = vsel %vm572, %v511, 0.0
  %v585 = vsel %vm573, %v512, 0.0
  %v586 = vsel %vm574, %v513, 0.0
  %v587 = vsel %vm575, %v514, 0.0
  %v588 = vsel %vm572, %v515, 0.0
  %v589 = vsel %vm573, %v516, 0.0
  %v590 = vsel %vm574, %v517, 0.0
  %v591 = vsel %vm575, %v518, 0.0
  %v592 = vsel %vm572, %v519, 0.0
  %v593 = vsel %vm573, %v520, 0.0
  %v594 = vsel %vm574, %v521, 0.0
  %v595 = vsel %vm575, %v522, 0.0
  %v596 = vsel %vm572, %v523, 0.0
  %v597 = vsel %vm573, %v524, 0.0
  %v598 = vsel %vm574, %v525, 0.0
  %v599 = vsel %vm575, %v526, 0.0
  %v600 = vsel %vm572, %v527, 0.0
  %v601 = vsel %vm573, %v528, 0.0
  %v602 = vsel %vm574, %v529, 0.0
  %v603 = vsel %vm575, %v530, 0.0
  %v604 = vsel %vm572, %v531, 0.0
  %v605 = vsel %vm573, %v532, 0.0
  %v606 = vsel %vm574, %v533, 0.0
  %v607 = vsel %vm575, %v534, 0.0
  %v608 = vsel %vm572, %v535, 0.0
  %v609 = vsel %vm573, %v536, 0.0
  %v610 = vsel %vm574, %v537, 0.0
  %v611 = vsel %vm575, %v538, 0.0
  %v612 = vsel %vm572, %v539, 0.0
  %v613 = vsel %vm573, %v540, 0.0
  %v614 = vsel %vm574, %v541, 0.0
  %v615 = vsel %vm575, %v542, 0.0
  %v616 = vsel %vm572, %v543, 0.0
  %v617 = vsel %vm573, %v544, 0.0
  %v618 = vsel %vm574, %v545, 0.0
  %v619 = vsel %vm575, %v546, 0.0
  %v620 = vsel %vm572, %v547, 0.0
  %v621 = vsel %vm573, %v548, 0.0
  %v622 = vsel %vm574, %v549, 0.0
  %v623 = vsel %vm575, %v550, 0.0
  %v624 = vsel %vm572, %v551, 0.0
  %v625 = vsel %vm573, %v552, 0.0
  %v626 = vsel %vm574, %v553, 0.0
  %v627 = vsel %vm575, %v554, 0.0
  %v628 = vsel %vm572, %v555, 0.0
  %v629 = vsel %vm573, %v556, 0.0
  %v630 = vsel %vm574, %v557, 0.0
  %v631 = vsel %vm575, %v558, 0.0
  %v632 = vsel %vm572, %v559, 0.0
  %v633 = vsel %vm573, %v560, 0.0
  %v634 = vsel %vm574, %v561, 0.0
  %v635 = vsel %vm575, %v562, 0.0
  %v636 = vsel %vm572, %v563, 0.0
  %v637 = vsel %vm573, %v564, 0.0
  %v638 = vsel %vm574, %v565, 0.0
  %v639 = vsel %vm575, %v566, 0.0
  %vm640 = vcmask 261120
  %v641 = vsel %vm640, %v576, -inf
  %v642 = vsel %vm640, %v577, -inf
  %v643 = vmax.f32 %v641, %v642
  %v644 = vsel %vm640, %v578, -inf
  %v645 = vmax.f32 %v643, %v644
  %v646 = vsel %vm640, %v579, -inf
  %v647 = vmax.f32 %v645, %v646
  %v648 = vrot.slane %v647, 4
  %v649 = vmax.f32 %v647, %v648
  %v650 = vrot.slane %v649, 2
  %v651 = vmax.f32 %v649, %v650
  %v652 = vrot.slane %v651, 1
  %v653 = vmax.f32 %v651, %v652
  %v654 = vsel %vm640, %v580, -inf
  %v655 = vsel %vm640, %v581, -inf
  %v656 = vmax.f32 %v654, %v655
  %v657 = vsel %vm640, %v582, -inf
  %v658 = vmax.f32 %v656, %v657
  %v659 = vsel %vm640, %v583, -inf
  %v660 = vmax.f32 %v658, %v659
  %v661 = vrot.slane %v660, 4
  %v662 = vmax.f32 %v660, %v661
  %v663 = vrot.slane %v662, 2
  %v664 = vmax.f32 %v662, %v663
  %v665 = vrot.slane %v664, 1
  %v666 = vmax.f32 %v664, %v665
  %v667 = vsel %vm640, %v584, -inf
  %v668 = vsel %vm640, %v585, -inf
  %v669 = vmax.f32 %v667, %v668
  %v670 = vsel %vm640, %v586, -inf
  %v671 = vmax.f32 %v669, %v670
  %v672 = vsel %vm640, %v587, -inf
  %v673 = vmax.f32 %v671, %v672
  %v674 = vrot.slane %v673, 4
  %v675 = vmax.f32 %v673, %v674
  %v676 = vrot.slane %v675, 2
  %v677 = vmax.f32 %v675, %v676
  %v678 = vrot.slane %v677, 1
  %v679 = vmax.f32 %v677, %v678
  %v680 = vsel %vm640, %v588, -inf
  %v681 = vsel %vm640, %v589, -inf
  %v682 = vmax.f32 %v680, %v681
  %v683 = vsel %vm640, %v590, -inf
  %v684 = vmax.f32 %v682, %v683
  %v685 = vsel %vm640, %v591, -inf
  %v686 = vmax.f32 %v684, %v685
  %v687 = vrot.slane %v686, 4
  %v688 = vmax.f32 %v686, %v687
  %v689 = vrot.slane %v688, 2
  %v690 = vmax.f32 %v688, %v689
  %v691 = vrot.slane %v690, 1
  %v692 = vmax.f32 %v690, %v691
  %v693 = vsel %vm640, %v592, -inf
  %v694 = vsel %vm640, %v593, -inf
  %v695 = vmax.f32 %v693, %v694
  %v696 = vsel %vm640, %v594, -inf
  %v697 = vmax.f32 %v695, %v696
  %v698 = vsel %vm640, %v595, -inf
  %v699 = vmax.f32 %v697, %v698
  %v700 = vrot.slane %v699, 4
  %v701 = vmax.f32 %v699, %v700
  %v702 = vrot.slane %v701, 2
  %v703 = vmax.f32 %v701, %v702
  %v704 = vrot.slane %v703, 1
  %v705 = vmax.f32 %v703, %v704
  %v706 = vsel %vm640, %v596, -inf
  %v707 = vsel %vm640, %v597, -inf
  %v708 = vmax.f32 %v706, %v707
  %v709 = vsel %vm640, %v598, -inf
  %v710 = vmax.f32 %v708, %v709
  %v711 = vsel %vm640, %v599, -inf
  %v712 = vmax.f32 %v710, %v711
  %v713 = vrot.slane %v712, 4
  %v714 = vmax.f32 %v712, %v713
  %v715 = vrot.slane %v714, 2
  %v716 = vmax.f32 %v714, %v715
  %v717 = vrot.slane %v716, 1
  %v718 = vmax.f32 %v716, %v717
  %v719 = vsel %vm640, %v600, -inf
  %v720 = vsel %vm640, %v601, -inf
  %v721 = vmax.f32 %v719, %v720
  %v722 = vsel %vm640, %v602, -inf
  %v723 = vmax.f32 %v721, %v722
  %v724 = vsel %vm640, %v603, -inf
  %v725 = vmax.f32 %v723, %v724
  %v726 = vrot.slane %v725, 4
  %v727 = vmax.f32 %v725, %v726
  %v728 = vrot.slane %v727, 2
  %v729 = vmax.f32 %v727, %v728
  %v730 = vrot.slane %v729, 1
  %v731 = vmax.f32 %v729, %v730
  %v732 = vsel %vm640, %v604, -inf
  %v733 = vsel %vm640, %v605, -inf
  %v734 = vmax.f32 %v732, %v733
  %v735 = vsel %vm640, %v606, -inf
  %v736 = vmax.f32 %v734, %v735
  %v737 = vsel %vm640, %v607, -inf
  %v738 = vmax.f32 %v736, %v737
  %v739 = vrot.slane %v738, 4
  %v740 = vmax.f32 %v738, %v739
  %v741 = vrot.slane %v740, 2
  %v742 = vmax.f32 %v740, %v741
  %v743 = vrot.slane %v742, 1
  %v744 = vmax.f32 %v742, %v743
  %v745 = vsel %vm640, %v608, -inf
  %v746 = vsel %vm640, %v609, -inf
  %v747 = vmax.f32 %v745, %v746
  %v748 = vsel %vm640, %v610, -inf
  %v749 = vmax.f32 %v747, %v748
  %v750 = vsel %vm640, %v611, -inf
  %v751 = vmax.f32 %v749, %v750
  %v752 = vrot.slane %v751, 4
  %v753 = vmax.f32 %v751, %v752
  %v754 = vrot.slane %v753, 2
  %v755 = vmax.f32 %v753, %v754
  %v756 = vrot.slane %v755, 1
  %v757 = vmax.f32 %v755, %v756
  %v758 = vsel %vm640, %v612, -inf
  %v759 = vsel %vm640, %v613, -inf
  %v760 = vmax.f32 %v758, %v759
  %v761 = vsel %vm640, %v614, -inf
  %v762 = vmax.f32 %v760, %v761
  %v763 = vsel %vm640, %v615, -inf
  %v764 = vmax.f32 %v762, %v763
  %v765 = vrot.slane %v764, 4
  %v766 = vmax.f32 %v764, %v765
  %v767 = vrot.slane %v766, 2
  %v768 = vmax.f32 %v766, %v767
  %v769 = vrot.slane %v768, 1
  %v770 = vmax.f32 %v768, %v769
  %v771 = vsel %vm640, %v616, -inf
  %v772 = vsel %vm640, %v617, -inf
  %v773 = vmax.f32 %v771, %v772
  %v774 = vsel %vm640, %v618, -inf
  %v775 = vmax.f32 %v773, %v774
  %v776 = vsel %vm640, %v619, -inf
  %v777 = vmax.f32 %v775, %v776
  %v778 = vrot.slane %v777, 4
  %v779 = vmax.f32 %v777, %v778
  %v780 = vrot.slane %v779, 2
  %v781 = vmax.f32 %v779, %v780
  %v782 = vrot.slane %v781, 1
  %v783 = vmax.f32 %v781, %v782
  %v784 = vsel %vm640, %v620, -inf
  %v785 = vsel %vm640, %v621, -inf
  %v786 = vmax.f32 %v784, %v785
  %v787 = vsel %vm640, %v622, -inf
  %v788 = vmax.f32 %v786, %v787
  %v789 = vsel %vm640, %v623, -inf
  %v790 = vmax.f32 %v788, %v789
  %v791 = vrot.slane %v790, 4
  %v792 = vmax.f32 %v790, %v791
  %v793 = vrot.slane %v792, 2
  %v794 = vmax.f32 %v792, %v793
  %v795 = vrot.slane %v794, 1
  %v796 = vmax.f32 %v794, %v795
  %v797 = vsel %vm640, %v624, -inf
  %v798 = vsel %vm640, %v625, -inf
  %v799 = vmax.f32 %v797, %v798
  %v800 = vsel %vm640, %v626, -inf
  %v801 = vmax.f32 %v799, %v800
  %v802 = vsel %vm640, %v627, -inf
  %v803 = vmax.f32 %v801, %v802
  %v804 = vrot.slane %v803, 4
  %v805 = vmax.f32 %v803, %v804
  %v806 = vrot.slane %v805, 2
  %v807 = vmax.f32 %v805, %v806
  %v808 = vrot.slane %v807, 1
  %v809 = vmax.f32 %v807, %v808
  %v810 = vsel %vm640, %v628, -inf
  %v811 = vsel %vm640, %v629, -inf
  %v812 = vmax.f32 %v810, %v811
  %v813 = vsel %vm640, %v630, -inf
  %v814 = vmax.f32 %v812, %v813
  %v815 = vsel %vm640, %v631, -inf
  %v816 = vmax.f32 %v814, %v815
  %v817 = vrot.slane %v816, 4
  %v818 = vmax.f32 %v816, %v817
  %v819 = vrot.slane %v818, 2
  %v820 = vmax.f32 %v818, %v819
  %v821 = vrot.slane %v820, 1
  %v822 = vmax.f32 %v820, %v821
  %v823 = vsel %vm640, %v632, -inf
  %v824 = vsel %vm640, %v633, -inf
  %v825 = vmax.f32 %v823, %v824
  %v826 = vsel %vm640, %v634, -inf
  %v827 = vmax.f32 %v825, %v826
  %v828 = vsel %vm640, %v635, -inf
  %v829 = vmax.f32 %v827, %v828
  %v830 = vrot.slane %v829, 4
  %v831 = vmax.f32 %v829, %v830
  %v832 = vrot.slane %v831, 2
  %v833 = vmax.f32 %v831, %v832
  %v834 = vrot.slane %v833, 1
  %v835 = vmax.f32 %v833, %v834
  %v836 = vsel %vm640, %v636, -inf
  %v837 = vsel %vm640, %v637, -inf
  %v838 = vmax.f32 %v836, %v837
  %v839 = vsel %vm640, %v638, -inf
  %v840 = vmax.f32 %v838, %v839
  %v841 = vsel %vm640, %v639, -inf
  %v842 = vmax.f32 %v840, %v841
  %v843 = vrot.slane %v842, 4
  %v844 = vmax.f32 %v842, %v843
  %v845 = vrot.slane %v844, 2
  %v846 = vmax.f32 %v844, %v845
  %v847 = vrot.slane %v846, 1
  %v848 = vmax.f32 %v846, %v847
  %v849 = vld [vmem:[%s2] sm:$0xff]
  %v850 = vld [vmem:[%s2 + $0x8] sm:$0xff]
  %v851 = vld [vmem:[%s2 + $0x10] sm:$0xff]
  %v852 = vld [vmem:[%s2 + $0x18] sm:$0xff]
  %v853 = vld [vmem:[%s2 + $0x28] sm:$0x1]
  %v854 = vperm.slane %v853, 0
  %vm871 = vcmask 1041409
  %v872 = vsel %vm871, %v666, %v653
  %vm873 = vcmask 1042434
  %v874 = vsel %vm873, %v679, %v872
  %vm875 = vcmask 1043459
  %v876 = vsel %vm875, %v692, %v874
  %vm877 = vcmask 1044484
  %v878 = vsel %vm877, %v705, %v876
  %vm879 = vcmask 1045509
  %v880 = vsel %vm879, %v718, %v878
  %vm881 = vcmask 1046534
  %v882 = vsel %vm881, %v731, %v880
  %vm883 = vcmask 1047559
  %v884 = vsel %vm883, %v744, %v882
  %v885 = vsel %vm871, %v770, %v757
  %v886 = vsel %vm873, %v783, %v885
  %v887 = vsel %vm875, %v796, %v886
  %v888 = vsel %vm877, %v809, %v887
  %v889 = vsel %vm879, %v822, %v888
  %v890 = vsel %vm881, %v835, %v889
  %v891 = vsel %vm883, %v848, %v890
  %v892 = vsel %vm640, %v884, 0
  %v894 = vsel %vm640, %v891, 0
  %896 = vmatpush.msra.mxu0 0.0
  %897 = vmatpush.msra.mxu0 0.0
  %898 = vmatpush.msra.mxu0 0.0
  %899 = vmatpush.msra.mxu0 0.0
  %900 = vmatpush.msra.mxu0 0.0
  %901 = vmatpush.msra.mxu0 0.0
  %902 = vmatpush.msra.mxu0 0.0
  %903 = vmatpush.msra.mxu0 0.0
  %904 = vmatpush.msra.mxu0 0.0
  %905 = vmatpush.msra.mxu0 0.0
  %906 = vmatpush.msra.mxu0 0.0
  %907 = vmatpush.msra.mxu0 0.0
  %908 = vmatpush.msra.mxu0 %v852
  %909 = vmatpush.msra.mxu0 %v851
  %910 = vmatpush.msra.mxu0 %v850
  %911 = vmatpush.msra.mxu0 %v849
  %912 = vmatmul.f32.gmra.mxu0 %v892
  %v913 = vpop.f32.mrf.mxu0
  %v914 = vadd.f32 %v854, %v913
  %915 = vmatmul.f32.gmra.mxu0 %v894
  %v916 = vpop.f32.mrf.mxu0
  %v917 = vadd.f32 %v854, %v916
  %918 = vdwg.mxu0
  %v919 = vlaneseq
  %v920 = vand.u32 %v919, 127
  %vm921 = vcmp.lt.s32.totalorder %v920, 32
  %v922 = vsel %vm921, %v914, %v917
  %v923 = vld [vmem:[%s2 + $0x20] sm:$0xff]
  %v924 = vmul.f32 %v922, 0.0
  %v925 = vadd.f32 %v924, %v923
  %v926 = vld [vmem:[%s2 + $0x30] sm:$0xff]
  %v927 = vld [vmem:[%s2 + $0x38] sm:$0xff]
  %v928 = vld [vmem:[%s2 + $0x40] sm:$0xff]
  %v929 = vld [vmem:[%s2 + $0x48] sm:$0xff]
  %v930 = vld [vmem:[%s2 + $0x50] sm:$0xff]
  %v931 = vld [vmem:[%s2 + $0x58] sm:$0xff]
  %v932 = vld [vmem:[%s2 + $0x60] sm:$0xff]
  %v933 = vld [vmem:[%s2 + $0x68] sm:$0xff]
  %v934 = vmul.f32 %v925, %v925
  %vm935 = vcmask 523264
  %v937 = vsel %vm935, %v925, 0
  %v940 = vsel %vm935, %v934, 0
  %942 = vmatpush.msra.mxu0 0.0
  %943 = vmatpush.msra.mxu0 0.0
  %944 = vmatpush.msra.mxu0 0.0
  %945 = vmatpush.msra.mxu0 0.0
  %946 = vmatpush.msra.mxu0 0.0
  %947 = vmatpush.msra.mxu0 0.0
  %948 = vmatpush.msra.mxu0 0.0
  %949 = vmatpush.msra.mxu0 0.0
  %950 = vmatpush.msra.mxu0 %v933
  %951 = vmatpush.msra.mxu0 %v932
  %952 = vmatpush.msra.mxu0 %v931
  %953 = vmatpush.msra.mxu0 %v930
  %954 = vmatpush.msra.mxu0 %v929
  %955 = vmatpush.msra.mxu0 %v928
  %956 = vmatpush.msra.mxu0 %v927
  %957 = vmatpush.msra.mxu0 %v926
  %958 = vmatmul.f32.gmra.mxu0 %v937
  %v959 = vpop.f32.mrf.mxu0
  %v960 = vadd.f32 0.0, %v959
  %961 = vmatmul.f32.gmra.mxu0 %v940
  %v962 = vpop.f32.mrf.mxu0
  %v963 = vadd.f32 0.0, %v962
  %964 = vdwg.mxu0
  %vm965 = vcmp.lt.s32.totalorder %v920, 10
  %v966 = vmul.f32 %v960, 0.5
  %v967 = vmul.f32 %v966, %v960
  %vm968 = vcmp.eq.s32.totalorder %v920, 10
  %vm969 = vcmp.eq.s32.totalorder %v920, 11
  %v970 = vsub.f32 0.0, %v963
  %v971 = vsel %vm969, %v970, 0.0
  %v972 = vsel %vm968, %v960, %v971
  %v973 = vsel %vm965, %v967, %v972
  %vm974 = vcmask 130048
  %v975 = vsel %vm974, %v973, 0.0
  %976 = vadd.xlane.f32.xlu0 %v975
  %v977 = vpop.xlane.xlu0 %976
  %v978 = vld [vmem:[%s2 + $0x70] sm:$0xff]
  %v979 = vld [vmem:[%s2 + $0x78] sm:$0xff]
  %v980 = vadd.f32 %v977, %v978
  %v981 = vsub.f32 %v980, %v979
  %v982 = vmul.f32 %v981, %v981
  %vm983 = vcmask 7168
  %v984 = vsel %vm983, %v982, 0.0
  %v985 = vrot.slane %v984, 4
  %v986 = vadd.f32 %v984, %v985
  %v987 = vrot.slane %v986, 2
  %v988 = vadd.f32 %v986, %v987
  %v989 = vrot.slane %v988, 1
  %v990 = vadd.f32 %v988, %v989
  %vm991 = vcmp.eq.s32.totalorder %v920, 0
  %vm992 = vcmp.eq.s32.totalorder %v920, 1
  %vm993 = vcmp.eq.s32.totalorder %v920, 2
  %995 = vset.pattern.permute.xlu0 0
  %996 = vperm.xlu0 %995, %v990
  %v997 = vpop.permute.xlu0 %996
  %v999 = vsel %vm993, %v997, 0.0
  %1001 = vset.pattern.permute.xlu0 0
  %1002 = vperm.xlu0 %1001, %v982
  %v1003 = vpop.permute.xlu0 %1002
  %v1005 = vsel %vm992, %v1003, %v999
  %1007 = vset.pattern.permute.xlu0 0
  %1008 = vperm.xlu0 %1007, %v980
  %v1009 = vpop.permute.xlu0 %1008
  %v1011 = vsel %vm991, %v1009, %v1005
  %1012 = vst [vmem:[%s3] sm:$0xff] %v1011
  // Predicated region
  $region14: #{deepconn_forward.1} parent=0 // pred_check
    _
  $region15: #{deepconn_forward.1} parent=0 // pred_check_branch
    %1014 = sbr.rel (0) target = $region17
  $region16: #{deepconn_forward.1} parent=0 // pred_region
    _
  $region17: #{deepconn_forward.1} parent=0 // pred_fallthru
    _
  // Predicated region
  $region18: #{deepconn_forward.1} parent=0 // pred_check
    _
  $region19: #{deepconn_forward.1} parent=0 // pred_check_branch
    %1016 = sbr.rel (0) target = $region21
  $region20: #{deepconn_forward.1} parent=0 // pred_region
    _
  $region21: #{deepconn_forward.1} parent=0 // pred_fallthru
    _

</llo_original>
